<compile_context>
chip_gen: v6e
topology: v6e:2x2x1
jax: 0.10.0
libtpu: 0.0.40
codegen_flags: <defaults>
</compile_context>

<pallas_src>
import functools

import jax
import jax.numpy as jnp
from jax.experimental import pallas as pl
from jax.experimental.pallas import tpu as pltpu


def _round_up(x, m):
    return (x + m - 1) // m * m


def _pick_cout_tile(cout):
    for t in (128, 64, 32, 16, 8):
        if cout % t == 0:
            return t
    return cout  # full dim (allowed even if not a multiple of 8)


def _convblock_kernel(x_ref, w_ref, o_ref, *, K, stride, Ho, Wo, Wphp,
                      relu_slope, eps):
    """One (sample, Cout-tile) grid step.

    x_ref: (s*s, Cin, Lpad) bf16  flattened stride-phase grids of one sample
    w_ref: (K*K, TC, Cin)   bf16  per-tap weight slices of this Cout tile
    o_ref: (TC, P)          bf16  P = Ho*Wphp (junk cols stripped by wrapper)
    """
    s = stride
    P = Ho * Wphp

    # Group conv taps by stride-phase. Within a phase each tap is a plain contiguous
    # lane slice of the same phase block, so taps are concatenated along the
    # contraction axis -> one MXU dot per phase instead of one per tap.
    taps_by_phase = {}
    for ki in range(K):
        for kj in range(K):
            ph = (ki % s) * s + (kj % s)
            taps_by_phase.setdefault(ph, []).append((ki, kj))

    acc = None
    for ph in sorted(taps_by_phase):
        taps = taps_by_phase[ph]
        x_cat = jnp.concatenate(
            [x_ref[ph, :, pl.ds((ki // s) * Wphp + (kj // s), P)]
             for (ki, kj) in taps], axis=0)                      # (T*Cin, P) bf16
        w_cat = jnp.concatenate(
            [w_ref[ki * K + kj] for (ki, kj) in taps], axis=1)   # (TC, T*Cin) bf16
        d = jnp.dot(w_cat, x_cat, preferred_element_type=jnp.float32)
        acc = d if acc is None else acc + d                      # first dot inits acc

    # InstanceNorm2d (affine=False, biased var, eps) over the Ho*Wo valid columns only,
    # one-pass moments.  Conv bias omitted: exactly cancelled by the mean subtraction.
    inv_n = 1.0 / float(Ho * Wo)
    if Wphp == Wo:
        masked = acc
    else:
        col = jax.lax.broadcasted_iota(jnp.int32, (1, P), 1)
        valid = (col % Wphp) < Wo                                # junk cols -> 0
        masked = jnp.where(valid, acc, 0.0)
    s1 = jnp.sum(masked, axis=1, keepdims=True)                  # (TC, 1)
    s2 = jnp.sum(masked * masked, axis=1, keepdims=True)         # (TC, 1)
    mean = s1 * inv_n
    var = s2 * inv_n - mean * mean
    y = (acc - mean) * jax.lax.rsqrt(var + eps)

    # LeakyReLU(relu_slope), store bf16.
    o_ref[...] = jnp.where(y >= 0, y, relu_slope * y).astype(o_ref.dtype)


@functools.partial(jax.jit, static_argnames=("stride", "relu_slope", "eps"))
def conv_block(x, weight, bias, stride, relu_slope=0.2, eps=1e-5):
    """x: (N, Cin, H, W); weight: (Cout, Cin, 4, 4); bias: (Cout,).
    Implements the default ConvBlock config (use_instance_norm=True); the bias is
    mathematically cancelled by InstanceNorm so it is not used in the kernel.
    Returns (N, Cout, Ho, Wo) in bf16 (post-norm unit scale)."""
    del bias  # exactly cancelled by InstanceNorm's per-channel mean subtraction
    N, Cin, H, W = x.shape
    Cout, _, K, _ = weight.shape
    s = int(stride)

    # bf16 up front: halves every HBM byte of the preprocessing below and feeds the
    # bf16 MXU path (accumulation stays f32 inside the kernel).
    x = x.astype(jnp.bfloat16)

    # reflect pad 1 (padding=1, padding_mode='reflect')
    xpad = jnp.pad(x, ((0, 0), (0, 0), (1, 1), (1, 1)), mode="reflect")
    Hp, Wp = H + 2, W + 2
    Ho = (Hp - K) // s + 1
    Wo = (Wp - K) // s + 1
    a_max = (K - 1) // s
    b_max = (K - 1) // s
    Hphp = Ho + a_max                 # rows per stride-phase
    Wphp = Wo + b_max                 # cols per stride-phase
    P = Ho * Wphp                     # flattened output columns (incl. junk cols)
    Lpad = _round_up(Hphp * Wphp + b_max, 128)

    # Stride-phase split via one reshape+transpose (no s*s strided gathers + stack).
    # Crop / zero-pad to exactly (s*Hphp, s*Wphp) first; valid outputs never read the
    # zero-padded region.
    Ht, Wt = s * Hphp, s * Wphp
    xpad = xpad[:, :, :min(Hp, Ht), :min(Wp, Wt)]
    xpad = jnp.pad(xpad, ((0, 0), (0, 0),
                          (0, Ht - xpad.shape[2]), (0, Wt - xpad.shape[3])))
    xph = xpad.reshape(N, Cin, Hphp, s, Wphp, s)
    xph = jnp.transpose(xph, (0, 3, 5, 1, 2, 4))          # (N, s, s, Cin, Hphp, Wphp)
    xph = xph.reshape(N, s * s, Cin, Hphp * Wphp)
    xph = jnp.pad(xph, ((0, 0), (0, 0), (0, 0), (0, Lpad - Hphp * Wphp)))

    # Per-tap weight slices: (K*K, Cout, Cin), bf16.
    w_taps = jnp.transpose(weight, (2, 3, 0, 1)).reshape(K * K, Cout, Cin)
    w_taps = w_taps.astype(jnp.bfloat16)

    tc = _pick_cout_tile(Cout)

    kernel = functools.partial(
        _convblock_kernel, K=K, stride=s, Ho=Ho, Wo=Wo, Wphp=Wphp,
        relu_slope=float(relu_slope), eps=float(eps))

    out = pl.pallas_call(
        kernel,
        out_shape=jax.ShapeDtypeStruct((N, Cout, P), jnp.bfloat16),
        grid_spec=pltpu.PrefetchScalarGridSpec(
            num_scalar_prefetch=0,
            # Cout tile is the inner axis so the (constant-per-sample) input-phase
            # block is not re-fetched between consecutive steps; both axes are fully
            # parallel (InstanceNorm is per output channel).
            grid=(N, Cout // tc),
            in_specs=[
                pl.BlockSpec((pl.Squeezed(), s * s, Cin, Lpad),
                             lambda n, c: (n, 0, 0, 0)),
                pl.BlockSpec((K * K, tc, Cin), lambda n, c: (0, c, 0)),
            ],
            out_specs=pl.BlockSpec((pl.Squeezed(), tc, P),
                                   lambda n, c: (n, c, 0)),
        ),
        compiler_params=pltpu.CompilerParams(
            dimension_semantics=("parallel", "parallel"),
        ),
    )(xph, w_taps)

    # (N, Cout, Ho*Wphp) -> (N, Cout, Ho, Wo): drop the junk columns (bf16 strip copy).
    return out.reshape(N, Cout, Ho, Wphp)[:, :, :, :Wo]


def _reference(x, weight, bias, stride, relu_slope=0.2, eps=1e-5):
    """Pure-JAX f32 reference of the PyTorch ConvBlock forward."""
    xpad = jnp.pad(x, ((0, 0), (0, 0), (1, 1), (1, 1)), mode="reflect")
    y = jax.lax.conv_general_dilated(
        xpad, weight, window_strides=(stride, stride), padding="VALID",
        dimension_numbers=("NCHW", "OIHW", "NCHW"))
    y = y + bias.reshape(1, -1, 1, 1)
    mean = jnp.mean(y, axis=(2, 3), keepdims=True)
    var = jnp.mean((y - mean) ** 2, axis=(2, 3), keepdims=True)
    yn = (y - mean) * jax.lax.rsqrt(var + eps)
    return jnp.where(yn >= 0, yn, relu_slope * yn)


if __name__ == "__main__":
    key = jax.random.PRNGKey(0)
    k_x, k_w, k_b = jax.random.split(key, 3)

    N, Cin, H, W = 2, 4, 16, 16
    Cout, K, stride = 8, 4, 2

    x = jax.random.normal(k_x, (N, Cin, H, W), dtype=jnp.float32)
    fan_in = Cin * K * K
    bound = 1.0 / (fan_in ** 0.5)
    weight = jax.random.uniform(k_w, (Cout, Cin, K, K),
                                minval=-bound, maxval=bound, dtype=jnp.float32)
    bias = jax.random.uniform(k_b, (Cout,),
                              minval=-bound, maxval=bound, dtype=jnp.float32)

    y = conv_block(x, weight, bias, stride=stride)
    jax.block_until_ready(y)
    assert y.shape == (N, Cout, H // stride, W // stride)

    # Correctness vs pure-JAX f32 reference (tolerance covers bf16 matmul inputs and
    # the bf16 output; accumulation and normalization are f32 in-kernel, and outputs
    # are instance-normalized so std ~ 1).
    y_ref = _reference(x, weight, bias, stride)
    err = float(jnp.max(jnp.abs(y.astype(jnp.float32) - y_ref)))
    assert err < 6e-2, f"max abs error {err}"
    print("KERNEL_OK")
</pallas_src>

<mosaic_0001>
module attributes {stable_mosaic.version = 11 : i64} {
  func.func @_convblock_kernel(%arg0: i32, %arg1: i32, %arg2: memref<1x4x4x128xbf16, #tpu.memory_space<vmem>>, %arg3: memref<16x8x4xbf16, #tpu.memory_space<vmem>>, %arg4: memref<1x8x72xbf16, #tpu.memory_space<vmem>>) attributes {dimension_semantics = [#tpu.dimension_semantics<parallel>, #tpu.dimension_semantics<parallel>], iteration_bounds = array<i64: 2, 1>, scalar_prefetch = 0 : i64, scratch_operands = 0 : i64, tpu.core_type = #tpu.core_type<tc>, window_params = [{transform_indices = @transform_0, window_bounds = array<i64: 1, 4, 4, 128>}, {transform_indices = @transform_1, window_bounds = array<i64: 16, 8, 4>}, {transform_indices = @transform_2, window_bounds = array<i64: 1, 8, 72>}]} {
    %c0 = arith.constant 0 : index
    %c0_0 = arith.constant 0 : index
    %c0_1 = arith.constant 0 : index
    %c0_2 = arith.constant 0 : index
    %0 = vector.load %arg2[%c0, %c0_0, %c0_1, %c0_2] : memref<1x4x4x128xbf16, #tpu.memory_space<vmem>>, vector<1x1x4x72xbf16>
    %1 = vector.shape_cast %0 : vector<1x1x4x72xbf16> to vector<4x72xbf16>
    %c0_3 = arith.constant 0 : index
    %c0_4 = arith.constant 0 : index
    %c0_5 = arith.constant 0 : index
    %c1 = arith.constant 1 : index
    %2 = vector.load %arg2[%c0_3, %c0_4, %c0_5, %c1] : memref<1x4x4x128xbf16, #tpu.memory_space<vmem>>, vector<1x1x4x72xbf16>
    %3 = vector.shape_cast %2 : vector<1x1x4x72xbf16> to vector<4x72xbf16>
    %c0_6 = arith.constant 0 : index
    %c0_7 = arith.constant 0 : index
    %c0_8 = arith.constant 0 : index
    %c9 = arith.constant 9 : index
    %4 = vector.load %arg2[%c0_6, %c0_7, %c0_8, %c9] : memref<1x4x4x128xbf16, #tpu.memory_space<vmem>>, vector<1x1x4x72xbf16>
    %5 = vector.shape_cast %4 : vector<1x1x4x72xbf16> to vector<4x72xbf16>
    %c0_9 = arith.constant 0 : index
    %c0_10 = arith.constant 0 : index
    %c0_11 = arith.constant 0 : index
    %c10 = arith.constant 10 : index
    %6 = vector.load %arg2[%c0_9, %c0_10, %c0_11, %c10] : memref<1x4x4x128xbf16, #tpu.memory_space<vmem>>, vector<1x1x4x72xbf16>
    %7 = vector.shape_cast %6 : vector<1x1x4x72xbf16> to vector<4x72xbf16>
    %8 = tpu.concatenate %1, %3, %5, %7 in 0 : vector<4x72xbf16>, vector<4x72xbf16>, vector<4x72xbf16>, vector<4x72xbf16> -> vector<16x72xbf16>
    %c0_12 = arith.constant 0 : index
    %c0_13 = arith.constant 0 : index
    %c0_14 = arith.constant 0 : index
    %9 = vector.load %arg3[%c0_12, %c0_13, %c0_14] : memref<16x8x4xbf16, #tpu.memory_space<vmem>>, vector<1x8x4xbf16>
    %10 = vector.shape_cast %9 : vector<1x8x4xbf16> to vector<8x4xbf16>
    %c2 = arith.constant 2 : index
    %c0_15 = arith.constant 0 : index
    %c0_16 = arith.constant 0 : index
    %11 = vector.load %arg3[%c2, %c0_15, %c0_16] : memref<16x8x4xbf16, #tpu.memory_space<vmem>>, vector<1x8x4xbf16>
    %12 = vector.shape_cast %11 : vector<1x8x4xbf16> to vector<8x4xbf16>
    %c8 = arith.constant 8 : index
    %c0_17 = arith.constant 0 : index
    %c0_18 = arith.constant 0 : index
    %13 = vector.load %arg3[%c8, %c0_17, %c0_18] : memref<16x8x4xbf16, #tpu.memory_space<vmem>>, vector<1x8x4xbf16>
    %14 = vector.shape_cast %13 : vector<1x8x4xbf16> to vector<8x4xbf16>
    %c10_19 = arith.constant 10 : index
    %c0_20 = arith.constant 0 : index
    %c0_21 = arith.constant 0 : index
    %15 = vector.load %arg3[%c10_19, %c0_20, %c0_21] : memref<16x8x4xbf16, #tpu.memory_space<vmem>>, vector<1x8x4xbf16>
    %16 = vector.shape_cast %15 : vector<1x8x4xbf16> to vector<8x4xbf16>
    %17 = tpu.concatenate %10, %12, %14, %16 in 1 : vector<8x4xbf16>, vector<8x4xbf16>, vector<8x4xbf16>, vector<8x4xbf16> -> vector<8x16xbf16>
    %cst = arith.constant dense<0.000000e+00> : vector<8x72xf32>
    %18 = tpu.matmul %17, %8, %cst {dimension_numbers = #tpu.dot_dimension_numbers<[1], [0], [0], [1], [0, 0, 1, 1], [], []>} : vector<8x16xbf16>, vector<16x72xbf16>, vector<8x72xf32> -> vector<8x72xf32>
    %c0_22 = arith.constant 0 : index
    %c1_23 = arith.constant 1 : index
    %c0_24 = arith.constant 0 : index
    %c0_25 = arith.constant 0 : index
    %19 = vector.load %arg2[%c0_22, %c1_23, %c0_24, %c0_25] : memref<1x4x4x128xbf16, #tpu.memory_space<vmem>>, vector<1x1x4x72xbf16>
    %20 = vector.shape_cast %19 : vector<1x1x4x72xbf16> to vector<4x72xbf16>
    %c0_26 = arith.constant 0 : index
    %c1_27 = arith.constant 1 : index
    %c0_28 = arith.constant 0 : index
    %c1_29 = arith.constant 1 : index
    %21 = vector.load %arg2[%c0_26, %c1_27, %c0_28, %c1_29] : memref<1x4x4x128xbf16, #tpu.memory_space<vmem>>, vector<1x1x4x72xbf16>
    %22 = vector.shape_cast %21 : vector<1x1x4x72xbf16> to vector<4x72xbf16>
    %c0_30 = arith.constant 0 : index
    %c1_31 = arith.constant 1 : index
    %c0_32 = arith.constant 0 : index
    %c9_33 = arith.constant 9 : index
    %23 = vector.load %arg2[%c0_30, %c1_31, %c0_32, %c9_33] : memref<1x4x4x128xbf16, #tpu.memory_space<vmem>>, vector<1x1x4x72xbf16>
    %24 = vector.shape_cast %23 : vector<1x1x4x72xbf16> to vector<4x72xbf16>
    %c0_34 = arith.constant 0 : index
    %c1_35 = arith.constant 1 : index
    %c0_36 = arith.constant 0 : index
    %c10_37 = arith.constant 10 : index
    %25 = vector.load %arg2[%c0_34, %c1_35, %c0_36, %c10_37] : memref<1x4x4x128xbf16, #tpu.memory_space<vmem>>, vector<1x1x4x72xbf16>
    %26 = vector.shape_cast %25 : vector<1x1x4x72xbf16> to vector<4x72xbf16>
    %27 = tpu.concatenate %20, %22, %24, %26 in 0 : vector<4x72xbf16>, vector<4x72xbf16>, vector<4x72xbf16>, vector<4x72xbf16> -> vector<16x72xbf16>
    %c1_38 = arith.constant 1 : index
    %c0_39 = arith.constant 0 : index
    %c0_40 = arith.constant 0 : index
    %28 = vector.load %arg3[%c1_38, %c0_39, %c0_40] : memref<16x8x4xbf16, #tpu.memory_space<vmem>>, vector<1x8x4xbf16>
    %29 = vector.shape_cast %28 : vector<1x8x4xbf16> to vector<8x4xbf16>
    %c3 = arith.constant 3 : index
    %c0_41 = arith.constant 0 : index
    %c0_42 = arith.constant 0 : index
    %30 = vector.load %arg3[%c3, %c0_41, %c0_42] : memref<16x8x4xbf16, #tpu.memory_space<vmem>>, vector<1x8x4xbf16>
    %31 = vector.shape_cast %30 : vector<1x8x4xbf16> to vector<8x4xbf16>
    %c9_43 = arith.constant 9 : index
    %c0_44 = arith.constant 0 : index
    %c0_45 = arith.constant 0 : index
    %32 = vector.load %arg3[%c9_43, %c0_44, %c0_45] : memref<16x8x4xbf16, #tpu.memory_space<vmem>>, vector<1x8x4xbf16>
    %33 = vector.shape_cast %32 : vector<1x8x4xbf16> to vector<8x4xbf16>
    %c11 = arith.constant 11 : index
    %c0_46 = arith.constant 0 : index
    %c0_47 = arith.constant 0 : index
    %34 = vector.load %arg3[%c11, %c0_46, %c0_47] : memref<16x8x4xbf16, #tpu.memory_space<vmem>>, vector<1x8x4xbf16>
    %35 = vector.shape_cast %34 : vector<1x8x4xbf16> to vector<8x4xbf16>
    %36 = tpu.concatenate %29, %31, %33, %35 in 1 : vector<8x4xbf16>, vector<8x4xbf16>, vector<8x4xbf16>, vector<8x4xbf16> -> vector<8x16xbf16>
    %cst_48 = arith.constant dense<0.000000e+00> : vector<8x72xf32>
    %37 = tpu.matmul %36, %27, %cst_48 {dimension_numbers = #tpu.dot_dimension_numbers<[1], [0], [0], [1], [0, 0, 1, 1], [], []>} : vector<8x16xbf16>, vector<16x72xbf16>, vector<8x72xf32> -> vector<8x72xf32>
    %38 = arith.addf %18, %37 : vector<8x72xf32>
    %c0_49 = arith.constant 0 : index
    %c2_50 = arith.constant 2 : index
    %c0_51 = arith.constant 0 : index
    %c0_52 = arith.constant 0 : index
    %39 = vector.load %arg2[%c0_49, %c2_50, %c0_51, %c0_52] : memref<1x4x4x128xbf16, #tpu.memory_space<vmem>>, vector<1x1x4x72xbf16>
    %40 = vector.shape_cast %39 : vector<1x1x4x72xbf16> to vector<4x72xbf16>
    %c0_53 = arith.constant 0 : index
    %c2_54 = arith.constant 2 : index
    %c0_55 = arith.constant 0 : index
    %c1_56 = arith.constant 1 : index
    %41 = vector.load %arg2[%c0_53, %c2_54, %c0_55, %c1_56] : memref<1x4x4x128xbf16, #tpu.memory_space<vmem>>, vector<1x1x4x72xbf16>
    %42 = vector.shape_cast %41 : vector<1x1x4x72xbf16> to vector<4x72xbf16>
    %c0_57 = arith.constant 0 : index
    %c2_58 = arith.constant 2 : index
    %c0_59 = arith.constant 0 : index
    %c9_60 = arith.constant 9 : index
    %43 = vector.load %arg2[%c0_57, %c2_58, %c0_59, %c9_60] : memref<1x4x4x128xbf16, #tpu.memory_space<vmem>>, vector<1x1x4x72xbf16>
    %44 = vector.shape_cast %43 : vector<1x1x4x72xbf16> to vector<4x72xbf16>
    %c0_61 = arith.constant 0 : index
    %c2_62 = arith.constant 2 : index
    %c0_63 = arith.constant 0 : index
    %c10_64 = arith.constant 10 : index
    %45 = vector.load %arg2[%c0_61, %c2_62, %c0_63, %c10_64] : memref<1x4x4x128xbf16, #tpu.memory_space<vmem>>, vector<1x1x4x72xbf16>
    %46 = vector.shape_cast %45 : vector<1x1x4x72xbf16> to vector<4x72xbf16>
    %47 = tpu.concatenate %40, %42, %44, %46 in 0 : vector<4x72xbf16>, vector<4x72xbf16>, vector<4x72xbf16>, vector<4x72xbf16> -> vector<16x72xbf16>
    %c4 = arith.constant 4 : index
    %c0_65 = arith.constant 0 : index
    %c0_66 = arith.constant 0 : index
    %48 = vector.load %arg3[%c4, %c0_65, %c0_66] : memref<16x8x4xbf16, #tpu.memory_space<vmem>>, vector<1x8x4xbf16>
    %49 = vector.shape_cast %48 : vector<1x8x4xbf16> to vector<8x4xbf16>
    %c6 = arith.constant 6 : index
    %c0_67 = arith.constant 0 : index
    %c0_68 = arith.constant 0 : index
    %50 = vector.load %arg3[%c6, %c0_67, %c0_68] : memref<16x8x4xbf16, #tpu.memory_space<vmem>>, vector<1x8x4xbf16>
    %51 = vector.shape_cast %50 : vector<1x8x4xbf16> to vector<8x4xbf16>
    %c12 = arith.constant 12 : index
    %c0_69 = arith.constant 0 : index
    %c0_70 = arith.constant 0 : index
    %52 = vector.load %arg3[%c12, %c0_69, %c0_70] : memref<16x8x4xbf16, #tpu.memory_space<vmem>>, vector<1x8x4xbf16>
    %53 = vector.shape_cast %52 : vector<1x8x4xbf16> to vector<8x4xbf16>
    %c14 = arith.constant 14 : index
    %c0_71 = arith.constant 0 : index
    %c0_72 = arith.constant 0 : index
    %54 = vector.load %arg3[%c14, %c0_71, %c0_72] : memref<16x8x4xbf16, #tpu.memory_space<vmem>>, vector<1x8x4xbf16>
    %55 = vector.shape_cast %54 : vector<1x8x4xbf16> to vector<8x4xbf16>
    %56 = tpu.concatenate %49, %51, %53, %55 in 1 : vector<8x4xbf16>, vector<8x4xbf16>, vector<8x4xbf16>, vector<8x4xbf16> -> vector<8x16xbf16>
    %cst_73 = arith.constant dense<0.000000e+00> : vector<8x72xf32>
    %57 = tpu.matmul %56, %47, %cst_73 {dimension_numbers = #tpu.dot_dimension_numbers<[1], [0], [0], [1], [0, 0, 1, 1], [], []>} : vector<8x16xbf16>, vector<16x72xbf16>, vector<8x72xf32> -> vector<8x72xf32>
    %58 = arith.addf %38, %57 : vector<8x72xf32>
    %c0_74 = arith.constant 0 : index
    %c3_75 = arith.constant 3 : index
    %c0_76 = arith.constant 0 : index
    %c0_77 = arith.constant 0 : index
    %59 = vector.load %arg2[%c0_74, %c3_75, %c0_76, %c0_77] : memref<1x4x4x128xbf16, #tpu.memory_space<vmem>>, vector<1x1x4x72xbf16>
    %60 = vector.shape_cast %59 : vector<1x1x4x72xbf16> to vector<4x72xbf16>
    %c0_78 = arith.constant 0 : index
    %c3_79 = arith.constant 3 : index
    %c0_80 = arith.constant 0 : index
    %c1_81 = arith.constant 1 : index
    %61 = vector.load %arg2[%c0_78, %c3_79, %c0_80, %c1_81] : memref<1x4x4x128xbf16, #tpu.memory_space<vmem>>, vector<1x1x4x72xbf16>
    %62 = vector.shape_cast %61 : vector<1x1x4x72xbf16> to vector<4x72xbf16>
    %c0_82 = arith.constant 0 : index
    %c3_83 = arith.constant 3 : index
    %c0_84 = arith.constant 0 : index
    %c9_85 = arith.constant 9 : index
    %63 = vector.load %arg2[%c0_82, %c3_83, %c0_84, %c9_85] : memref<1x4x4x128xbf16, #tpu.memory_space<vmem>>, vector<1x1x4x72xbf16>
    %64 = vector.shape_cast %63 : vector<1x1x4x72xbf16> to vector<4x72xbf16>
    %c0_86 = arith.constant 0 : index
    %c3_87 = arith.constant 3 : index
    %c0_88 = arith.constant 0 : index
    %c10_89 = arith.constant 10 : index
    %65 = vector.load %arg2[%c0_86, %c3_87, %c0_88, %c10_89] : memref<1x4x4x128xbf16, #tpu.memory_space<vmem>>, vector<1x1x4x72xbf16>
    %66 = vector.shape_cast %65 : vector<1x1x4x72xbf16> to vector<4x72xbf16>
    %67 = tpu.concatenate %60, %62, %64, %66 in 0 : vector<4x72xbf16>, vector<4x72xbf16>, vector<4x72xbf16>, vector<4x72xbf16> -> vector<16x72xbf16>
    %c5 = arith.constant 5 : index
    %c0_90 = arith.constant 0 : index
    %c0_91 = arith.constant 0 : index
    %68 = vector.load %arg3[%c5, %c0_90, %c0_91] : memref<16x8x4xbf16, #tpu.memory_space<vmem>>, vector<1x8x4xbf16>
    %69 = vector.shape_cast %68 : vector<1x8x4xbf16> to vector<8x4xbf16>
    %c7 = arith.constant 7 : index
    %c0_92 = arith.constant 0 : index
    %c0_93 = arith.constant 0 : index
    %70 = vector.load %arg3[%c7, %c0_92, %c0_93] : memref<16x8x4xbf16, #tpu.memory_space<vmem>>, vector<1x8x4xbf16>
    %71 = vector.shape_cast %70 : vector<1x8x4xbf16> to vector<8x4xbf16>
    %c13 = arith.constant 13 : index
    %c0_94 = arith.constant 0 : index
    %c0_95 = arith.constant 0 : index
    %72 = vector.load %arg3[%c13, %c0_94, %c0_95] : memref<16x8x4xbf16, #tpu.memory_space<vmem>>, vector<1x8x4xbf16>
    %73 = vector.shape_cast %72 : vector<1x8x4xbf16> to vector<8x4xbf16>
    %c15 = arith.constant 15 : index
    %c0_96 = arith.constant 0 : index
    %c0_97 = arith.constant 0 : index
    %74 = vector.load %arg3[%c15, %c0_96, %c0_97] : memref<16x8x4xbf16, #tpu.memory_space<vmem>>, vector<1x8x4xbf16>
    %75 = vector.shape_cast %74 : vector<1x8x4xbf16> to vector<8x4xbf16>
    %76 = tpu.concatenate %69, %71, %73, %75 in 1 : vector<8x4xbf16>, vector<8x4xbf16>, vector<8x4xbf16>, vector<8x4xbf16> -> vector<8x16xbf16>
    %cst_98 = arith.constant dense<0.000000e+00> : vector<8x72xf32>
    %77 = tpu.matmul %76, %67, %cst_98 {dimension_numbers = #tpu.dot_dimension_numbers<[1], [0], [0], [1], [0, 0, 1, 1], [], []>} : vector<8x16xbf16>, vector<16x72xbf16>, vector<8x72xf32> -> vector<8x72xf32>
    %78 = arith.addf %58, %77 : vector<8x72xf32>
    %79 = tpu.iota {dimensions = array<i32: 1>} : vector<1x72xi32>
    %c9_i32 = arith.constant 9 : i32
    %c0_i32 = arith.constant 0 : i32
    %80 = arith.cmpi eq, %c9_i32, %c0_i32 : i32
    %c1_i32 = arith.constant 1 : i32
    %81 = arith.select %80, %c1_i32, %c9_i32 : i32
    %82 = vector.broadcast %81 : i32 to vector<1x72xi32>
    %83 = arith.remsi %79, %82 : vector<1x72xi32>
    %c0_i32_99 = arith.constant 0 : i32
    %84 = vector.broadcast %c0_i32_99 : i32 to vector<1x72xi32>
    %85 = arith.cmpi ne, %83, %84 : vector<1x72xi32>
    %c0_i32_100 = arith.constant 0 : i32
    %86 = vector.broadcast %c0_i32_100 : i32 to vector<1x72xi32>
    %87 = arith.cmpi slt, %83, %86 : vector<1x72xi32>
    %c0_i32_101 = arith.constant 0 : i32
    %88 = arith.cmpi slt, %81, %c0_i32_101 : i32
    %89 = vector.broadcast %88 : i1 to vector<1x72xi1>
    %90 = vector.broadcast %89 : vector<1x72xi1> to vector<1x72xi1>
    %91 = arith.xori %87, %90 : vector<1x72xi1>
    %92 = arith.andi %91, %85 : vector<1x72xi1>
    %93 = vector.broadcast %81 : i32 to vector<1x72xi32>
    %94 = arith.addi %83, %93 : vector<1x72xi32>
    %95 = arith.select %92, %94, %83 : vector<1x72xi1>, vector<1x72xi32>
    %c8_i32 = arith.constant 8 : i32
    %96 = vector.broadcast %c8_i32 : i32 to vector<1x72xi32>
    %97 = arith.cmpi slt, %95, %96 : vector<1x72xi32>
    %cst_102 = arith.constant 0.000000e+00 : f32
    %98 = vector.shape_cast %97 : vector<1x72xi1> to vector<1x72xi1>
    %99 = vector.broadcast %98 : vector<1x72xi1> to vector<8x72xi1>
    %100 = vector.broadcast %cst_102 : f32 to vector<8x72xf32>
    %101 = arith.select %99, %78, %100 : vector<8x72xi1>, vector<8x72xf32>
    %cst_103 = arith.constant dense<0.000000e+00> : vector<8xf32>
    %102 = vector.multi_reduction <add>, %101, %cst_103 [1] : vector<8x72xf32> to vector<8xf32>
    %103 = vector.shape_cast %102 : vector<8xf32> to vector<8x1xf32>
    %104 = arith.mulf %101, %101 : vector<8x72xf32>
    %cst_104 = arith.constant dense<0.000000e+00> : vector<8xf32>
    %105 = vector.multi_reduction <add>, %104, %cst_104 [1] : vector<8x72xf32> to vector<8xf32>
    %106 = vector.shape_cast %105 : vector<8xf32> to vector<8x1xf32>
    %cst_105 = arith.constant 1.562500e-02 : f32
    %107 = vector.broadcast %cst_105 : f32 to vector<8x1xf32>
    %108 = arith.mulf %103, %107 : vector<8x1xf32>
    %cst_106 = arith.constant 1.562500e-02 : f32
    %109 = vector.broadcast %cst_106 : f32 to vector<8x1xf32>
    %110 = arith.mulf %106, %109 : vector<8x1xf32>
    %111 = arith.mulf %108, %108 : vector<8x1xf32>
    %112 = arith.subf %110, %111 : vector<8x1xf32>
    %113 = vector.broadcast %108 : vector<8x1xf32> to vector<8x72xf32>
    %114 = arith.subf %78, %113 : vector<8x72xf32>
    %cst_107 = arith.constant 9.99999974E-6 : f32
    %115 = vector.broadcast %cst_107 : f32 to vector<8x1xf32>
    %116 = arith.addf %112, %115 : vector<8x1xf32>
    %117 = math.rsqrt %116 : vector<8x1xf32>
    %118 = vector.broadcast %117 : vector<8x1xf32> to vector<8x72xf32>
    %119 = arith.mulf %114, %118 : vector<8x72xf32>
    %cst_108 = arith.constant 0.000000e+00 : f32
    %120 = vector.broadcast %cst_108 : f32 to vector<8x72xf32>
    %121 = arith.cmpf oge, %119, %120 : vector<8x72xf32>
    %cst_109 = arith.constant 2.000000e-01 : f32
    %122 = vector.broadcast %cst_109 : f32 to vector<8x72xf32>
    %123 = arith.mulf %122, %119 : vector<8x72xf32>
    %124 = arith.select %121, %119, %123 : vector<8x72xi1>, vector<8x72xf32>
    %125 = arith.truncf %124 : vector<8x72xf32> to vector<8x72xbf16>
    %c0_110 = arith.constant 0 : index
    %c0_111 = arith.constant 0 : index
    %c0_112 = arith.constant 0 : index
    %126 = vector.load %arg4[%c0_110, %c0_111, %c0_112] : memref<1x8x72xbf16, #tpu.memory_space<vmem>>, vector<1x8x72xbf16>
    %127 = vector.shape_cast %126 : vector<1x8x72xbf16> to vector<8x72xbf16>
    %128 = vector.shape_cast %125 : vector<8x72xbf16> to vector<1x8x72xbf16>
    tpu.vector_store %arg4[%c0_110, %c0_111, %c0_112], %128 {strides = array<i32>} : memref<1x8x72xbf16, #tpu.memory_space<vmem>>, vector<1x8x72xbf16>,
    return
  }
  func.func @transform_0(%arg0: i32, %arg1: i32) -> (i32, i32, i32, i32) {
    %c0_i32 = arith.constant 0 : i32
    %c0_i32_0 = arith.constant 0 : i32
    %c0_i32_1 = arith.constant 0 : i32
    %c0_i32_2 = arith.constant 0 : i32
    return %arg0, %c0_i32, %c0_i32_0, %c0_i32_1 : i32, i32, i32, i32
  }
  func.func @transform_1(%arg0: i32, %arg1: i32) -> (i32, i32, i32) {
    %c0_i32 = arith.constant 0 : i32
    %c0_i32_0 = arith.constant 0 : i32
    %c0_i32_1 = arith.constant 0 : i32
    return %c0_i32, %arg1, %c0_i32_0 : i32, i32, i32
  }
  func.func @transform_2(%arg0: i32, %arg1: i32) -> (i32, i32, i32) {
    %c0_i32 = arith.constant 0 : i32
    %c0_i32_0 = arith.constant 0 : i32
    return %arg0, %arg1, %c0_i32 : i32, i32, i32
  }
}

</mosaic_0001>

<llo_original>
// kernel: conv_block.1
$region0: #{conv_block.1}
  #allocation0 [shape = 'u32[]', space=smem, size = 0x4, offset = 0x4, fixed_abs, tag = 'smem constant byte address 0x4 - core index']
  #allocation1 [shape = 'u32[144,128]{1,0:T(1,128)}', space=vmem, size = 0x12000, scoped, tag = 'internal scratch']
  %s0 = inlined_call_operand.vmem [shape: bf16[2,4,4,128], index: 0, kind: input, shape index: {}]
  %s1 = inlined_call_operand.vmem [shape: bf16[16,8,4], index: 1, kind: input, shape index: {}]
  %s2 = inlined_call_operand.vmem [shape: bf16[2,8,72], index: 2, kind: output, shape index: {}]
  %s3 = sld [smem:[#allocation0]]
  $region41: #{conv_block.1} parent=0
    _
  %s5 = ssub.s32 1, %s3
  %s6 = scalar_select 0, %s5, %s3
  loop: start=0, step=1, limit=4
  $region2: #{conv_block.1} parent=0 // loop_pre_header
    _
  $region3: #{conv_block.1} parent=0 // loop_header
    %s8 = sphi 0, %s12
    %p9 = scmp.ge.s32.totalorder %s8, 4
    %s15 = sphi 0, %s27
    %s16 = sphi 0, %s23
    %s17 = sphi 0, %s15
    %s18 = sphi 0, %s16
    %s19 = sphi 0, %s17
    %s20 = sphi 0, %s18
    %s30 = sphi 0, %s32
    %s33 = sphi 0, %s30
    %s34 = sphi 0, %s33
    %s50 = sphi 0, %s34
    %s56 = sphi 0, %s58
    %s59 = sphi 0, %s56
    %s60 = sphi 0, %s59
    %s76 = sphi 0, %s60
    %s84 = sphi 0, %s86
    %s87 = sphi 0, %s84
    %s88 = sphi 0, %s87
    %s104 = sphi 0, %s88
  $region4: #{conv_block.1} parent=0 // loop_header_branch
    %11 = sbr.rel (%p9) target = $region8
  $region5: #{conv_block.1} parent=0 // loop_body
    %s13 = ssub.s32 %s8, 1
    %s14 = ssub.s32 %s8, 2
    %s21 = sadd.s32 1, %s16
    %p22 = scmp.ge.s32.totalorder %s21, 1
    %s23 = scalar_select %p22, 0, %s21
    %s24 = sadd.s32 1, %s15
    %s25 = scalar_select %p22, %s24, %s15
    %p26 = scmp.ge.s32.totalorder %s25, 2
    %s27 = scalar_select %p26, 0, %s25
    %s28 = ssub.s32 %s15, %s27
    %p29 = scmp.eq.s32.totalorder %s28, 0
    %s31 = sadd.s32 %s30, 1
    %s32 = scalar_select %p29, %s30, %s31
    %p35 = pneg %p29
    %p36 = scmp.eq.s32.totalorder %s8, 1
    %p37 = por %p35, %p36
    %p38 = scmp.ne.s32.totalorder %s30, %s33
    %p39 = scmp.eq.s32.totalorder %s8, 0
    %p40 = por %p38, %p39
    %p41 = scmp.ne.s32.totalorder %s30, %s33
    %p42 = scmp.eq.s32.totalorder %s13, 1
    %p43 = por %p41, %p42
    %p44 = scmp.ne.s32.totalorder %s33, %s34
    %p45 = scmp.eq.s32.totalorder %s13, 0
    %p46 = por %p44, %p45
    %p47 = scmp.ne.s32.totalorder %s33, %s34
    %p48 = scmp.eq.s32.totalorder %s14, 1
    %p49 = por %p47, %p48
    %p51 = scmp.ne.s32.totalorder %s34, %s50
    %p52 = scmp.eq.s32.totalorder %s14, 0
    %p53 = por %p51, %p52
    %s54 = ssub.s32 %s16, %s23
    %p55 = scmp.eq.s32.totalorder %s54, 0
    %s57 = sadd.s32 %s56, 1
    %s58 = scalar_select %p55, %s56, %s57
    %p61 = pneg %p55
    %p62 = scmp.eq.s32.totalorder %s8, 1
    %p63 = por %p61, %p62
    %p64 = scmp.ne.s32.totalorder %s56, %s59
    %p65 = scmp.eq.s32.totalorder %s8, 0
    %p66 = por %p64, %p65
    %p67 = scmp.ne.s32.totalorder %s56, %s59
    %p68 = scmp.eq.s32.totalorder %s13, 1
    %p69 = por %p67, %p68
    %p70 = scmp.ne.s32.totalorder %s59, %s60
    %p71 = scmp.eq.s32.totalorder %s13, 0
    %p72 = por %p70, %p71
    %p73 = scmp.ne.s32.totalorder %s59, %s60
    %p74 = scmp.eq.s32.totalorder %s14, 1
    %p75 = por %p73, %p74
    %p77 = scmp.ne.s32.totalorder %s60, %s76
    %p78 = scmp.eq.s32.totalorder %s14, 0
    %p79 = por %p77, %p78
    %s80 = ssub.s32 %s15, %s27
    %s81 = ssub.s32 %s16, %s23
    %s82 = sor.u32 %s80, %s81
    %p83 = scmp.eq.s32.totalorder %s82, 0
    %s85 = sadd.s32 %s84, 1
    %s86 = scalar_select %p83, %s84, %s85
    %p89 = pneg %p83
    %p90 = scmp.eq.s32.totalorder %s8, 1
    %p91 = por %p89, %p90
    %p92 = scmp.ne.s32.totalorder %s84, %s87
    %p93 = scmp.eq.s32.totalorder %s8, 0
    %p94 = por %p92, %p93
    %p95 = scmp.ne.s32.totalorder %s84, %s87
    %p96 = scmp.eq.s32.totalorder %s13, 1
    %p97 = por %p95, %p96
    %p98 = scmp.ne.s32.totalorder %s87, %s88
    %p99 = scmp.eq.s32.totalorder %s13, 0
    %p100 = por %p98, %p99
    %p101 = scmp.ne.s32.totalorder %s87, %s88
    %p102 = scmp.eq.s32.totalorder %s14, 1
    %p103 = por %p101, %p102
    %p105 = scmp.ne.s32.totalorder %s88, %s104
    %p106 = scmp.eq.s32.totalorder %s14, 0
    %p107 = por %p105, %p106
    %p108 = scmp.le.s32.totalorder 1, %s8
    %p109 = scmp.lt.s32.totalorder %s8, 3
    %p110 = pnand %p108, %p109
    %p111 = pneg %p110
    // Predicated region
    $region9: #{conv_block.1} parent=5 // pred_check
      _
    $region10: #{conv_block.1} parent=5 // pred_check_branch
      %113 = sbr.rel (%p110) target = $region12
    $region11: #{conv_block.1} parent=5 // pred_region
      %s114 = ssub.s32 %s8, 1
      // Predicated region
      $region13: #{conv_block.1} parent=11 // pred_check
        %p115 = pneg %p72
      $region14: #{conv_block.1} parent=11 // pred_check_branch
        %117 = sbr.rel (%p115) target = $region16
      $region15: #{conv_block.1} parent=11 // pred_region
        %p118 = scmp.lt.s32.totalorder %s18, 0
        %s119 = scalar_select %p118, %s18, 0
        %s120 = smul.addr %s119, 4
        %s121 = scalar_lea.vmem %s1, %s120
      $region16: #{conv_block.1} parent=11 // pred_fallthru
        _
    $region12: #{conv_block.1} parent=5 // pred_fallthru
      _
    %p122 = scmp.lt.s32.totalorder %s8, 2
    // Predicated region
    $region17: #{conv_block.1} parent=5 // pred_check
      %p123 = pneg %p122
    $region18: #{conv_block.1} parent=5 // pred_check_branch
      %125 = sbr.rel (%p123) target = $region20
    $region19: #{conv_block.1} parent=5 // pred_region
      // Predicated region
      $region21: #{conv_block.1} parent=19 // pred_check
        %p126 = pneg %p40
      $region22: #{conv_block.1} parent=19 // pred_check_branch
        %128 = sbr.rel (%p126) target = $region24
      $region23: #{conv_block.1} parent=19 // pred_region
        %p129 = scmp.lt.s32.totalorder %s15, 1
        %s130 = scalar_select %p129, %s15, 1
        %s131 = smul.addr %s130, 4
        %s132 = smul.addr %s131, 2
        %s133 = scalar_lea.vmem %s0, %s132
      $region24: #{conv_block.1} parent=19 // pred_fallthru
        _
    $region20: #{conv_block.1} parent=5 // pred_fallthru
      _
    %p134 = scmp.le.s32.totalorder 1, %s8
    %p135 = scmp.lt.s32.totalorder %s8, 3
    %p136 = pnand %p134, %p135
    %p137 = pneg %p136
    // Predicated region
    $region25: #{conv_block.1} parent=5 // pred_check
      _
    $region26: #{conv_block.1} parent=5 // pred_check_branch
      %139 = sbr.rel (%p136) target = $region28
    $region27: #{conv_block.1} parent=5 // pred_region
      %s140 = ssub.s32 %s8, 1
      %p141 = scmp.lt.s32.totalorder %s17, 1
      %s142 = scalar_select %p141, %s17, 1
      %s143 = smul.addr %s142, 4
      %s144 = smul.addr %s143, 2
      %s145 = scalar_lea.vmem %s0, %s144
      %p146 = pneg %p46
      %p147 = pneg %p43
      %p148 = scmp.lt.s32.totalorder %s18, 0
      %s149 = scalar_select %p148, %s18, 0
      %s150 = smul.addr %s149, 4
      %s151 = scalar_lea.vmem %s1, %s150
      %p152 = pneg %p72
      %p153 = pneg %p69
      %p154 = pneg %p100
      %p155 = pneg %p97
      %p156 = scmp.lt.s32.totalorder %s17, 1
      %s157 = scalar_select %p156, %s17, 1
      %p158 = scmp.lt.s32.totalorder %s18, 0
      %s159 = scalar_select %p158, %s18, 0
      %s160 = sadd.s32 %s159, %s157
      %s161 = smul.addr %s160, 4
      %s162 = scalar_lea.vmem %s2, %s161
      %p163 = scmp.lt.s32.totalorder %s17, 1
      %s164 = scalar_select %p163, %s17, 1
      %s165 = smul.addr %s164, 4
      %s166 = smul.addr %s165, 2
      %s167 = scalar_lea.vmem %s0, %s166
      %p168 = scmp.lt.s32.totalorder %s18, 0
      %s169 = scalar_select %p168, %s18, 0
      %s170 = smul.addr %s169, 4
      %s171 = scalar_lea.vmem %s1, %s170
      %p172 = scmp.lt.s32.totalorder %s17, 1
      %s173 = scalar_select %p172, %s17, 1
      %p174 = scmp.lt.s32.totalorder %s18, 0
      %s175 = scalar_select %p174, %s18, 0
      %s176 = sadd.s32 %s175, %s173
      %s177 = smul.addr %s176, 4
      %s178 = scalar_lea.vmem %s2, %s177
      %v180 = vld [vmem:[%s167] sm:$0x3]
      %v182 = vcombine.low %v180, %v180
      %v184 = vunpack.c.l.s4 1983009808
      %v185 = vunpack.c.0.s8 %v184
      %v186 = vlaneseq
      %v187 = vshrl.u32 %v186, 7
      %v188 = vsub.s32 %v185, %v187
      %v189 = vrot.slane %v182, %v188
      %v191 = vunpack.c.l.s4 1983009808
      %v192 = vunpack.c.0.s8 %v191
      %v193 = vlaneseq
      %v194 = vshrl.u32 %v193, 7
      %v195 = vsub.s32 %v192, %v194
      %v196 = vrot.slane %v180, %v195
      %197 = vrot.lane.b32.xlu0 %v189, 127
      %v198 = vpop.permute.xlu0 %197
      %v199 = vcombine.low %v196, %v196
      %200 = vrot.lane.b32.xlu0 %v199, 119
      %v201 = vpop.permute.xlu0 %200
      %v202 = vcombine.low %v189, %v189
      %203 = vrot.lane.b32.xlu0 %v202, 118
      %v204 = vpop.permute.xlu0 %203
      %vm205 = vcmask 1041408
      %v208 = vsel %vm205, %v180, %v198
      %vm209 = vcmask 1043456
      %v211 = vsel %vm209, %v208, %v201
      %vm212 = vcmask 1045504
      %v214 = vsel %vm212, %v211, %v204
      %v216 = vld [vmem:[%s171] sm:$0xf]
      %s217 = scalar_lea.vmem %s171, 8
      %v218 = vld [vmem:[%s217] sm:$0xf]
      %s219 = scalar_lea.vmem %s171, 32
      %v220 = vld [vmem:[%s219] sm:$0xf]
      %s221 = scalar_lea.vmem %s171, 40
      %v222 = vld [vmem:[%s221] sm:$0xf]
      %v224 = vunpack.c.l.b16 %v218
      %v225 = vpack.c.b16 %v224, %v224
      %226 = vrot.lane.b32.xlu0 %v225, 4
      %v227 = vpop.permute.xlu0 %226
      %v229 = vunpack.c.l.b16 %v220
      %v230 = vpack.c.b16 %v229, %v229
      %231 = vrot.lane.b32.xlu0 %v230, 8
      %v232 = vpop.permute.xlu0 %231
      %v234 = vunpack.c.l.b16 %v222
      %v235 = vpack.c.b16 %v234, %v234
      %236 = vrot.lane.b32.xlu0 %v235, 12
      %v237 = vpop.permute.xlu0 %236
      %vm238 = vcmask 31744
      %v241 = vsel %vm238, %v216, %v227
      %vm242 = vcmask 64512
      %v244 = vsel %vm242, %v241, %v232
      %vm245 = vcmask 97280
      %v247 = vsel %vm245, %v244, %v237
      %s248 = scalar_lea.vmem %s167, 2
      %v249 = vld [vmem:[%s248] sm:$0x3]
      %v251 = vcombine.low %v249, %v249
      %v253 = vunpack.c.l.s4 1983009808
      %v254 = vunpack.c.0.s8 %v253
      %v255 = vlaneseq
      %v256 = vshrl.u32 %v255, 7
      %v257 = vsub.s32 %v254, %v256
      %v258 = vrot.slane %v251, %v257
      %v260 = vunpack.c.l.s4 1983009808
      %v261 = vunpack.c.0.s8 %v260
      %v262 = vlaneseq
      %v263 = vshrl.u32 %v262, 7
      %v264 = vsub.s32 %v261, %v263
      %v265 = vrot.slane %v249, %v264
      %266 = vrot.lane.b32.xlu0 %v258, 127
      %v267 = vpop.permute.xlu0 %266
      %v268 = vcombine.low %v265, %v265
      %269 = vrot.lane.b32.xlu0 %v268, 119
      %v270 = vpop.permute.xlu0 %269
      %v271 = vcombine.low %v258, %v258
      %272 = vrot.lane.b32.xlu0 %v271, 118
      %v273 = vpop.permute.xlu0 %272
      %v276 = vsel %vm205, %v249, %v267
      %v278 = vsel %vm209, %v276, %v270
      %v280 = vsel %vm212, %v278, %v273
      %s282 = scalar_lea.vmem %s171, 4
      %v283 = vld [vmem:[%s282] sm:$0xf]
      %s284 = scalar_lea.vmem %s171, 12
      %v285 = vld [vmem:[%s284] sm:$0xf]
      %s286 = scalar_lea.vmem %s171, 36
      %v287 = vld [vmem:[%s286] sm:$0xf]
      %s288 = scalar_lea.vmem %s171, 44
      %v289 = vld [vmem:[%s288] sm:$0xf]
      %v291 = vunpack.c.l.b16 %v285
      %v292 = vpack.c.b16 %v291, %v291
      %293 = vrot.lane.b32.xlu0 %v292, 4
      %v294 = vpop.permute.xlu0 %293
      %v296 = vunpack.c.l.b16 %v287
      %v297 = vpack.c.b16 %v296, %v296
      %298 = vrot.lane.b32.xlu0 %v297, 8
      %v299 = vpop.permute.xlu0 %298
      %v301 = vunpack.c.l.b16 %v289
      %v302 = vpack.c.b16 %v301, %v301
      %303 = vrot.lane.b32.xlu0 %v302, 12
      %v304 = vpop.permute.xlu0 %303
      %v307 = vsel %vm238, %v283, %v294
      %v309 = vsel %vm242, %v307, %v299
      %v311 = vsel %vm245, %v309, %v304
      %vm312 = vcmask 130048
      %v313 = vsel %vm312, %v311, 0
      %315 = vmatprep.subr.bf16.mxu0 0
      %316 = vmatpush1.bf16.msra.mxu0 0
      %317 = vmatprep.subr.bf16.mxu0 0
      %318 = vmatpush1.bf16.msra.mxu0 0
      %319 = vmatprep.subr.bf16.mxu0 0
      %320 = vmatpush1.bf16.msra.mxu0 0
      %321 = vmatprep.subr.bf16.mxu0 0
      %322 = vmatpush1.bf16.msra.mxu0 0
      %323 = vmatprep.subr.bf16.mxu0 0
      %324 = vmatpush1.bf16.msra.mxu0 0
      %325 = vmatprep.subr.bf16.mxu0 0
      %326 = vmatpush1.bf16.msra.mxu0 0
      %327 = vmatprep.subr.bf16.mxu0 0
      %328 = vmatpush1.bf16.msra.mxu0 0
      %329 = vmatprep.subr.bf16.mxu0 0
      %330 = vmatpush1.bf16.msra.mxu0 %v280
      %331 = vmatprep.subr.bf16.mxu0 0
      %332 = vmatpush2.bf16.msra.mxu0 0
      %333 = vmatprep.subr.bf16.mxu0 0
      %334 = vmatpush2.bf16.msra.mxu0 0
      %335 = vmatprep.subr.bf16.mxu0 0
      %336 = vmatpush2.bf16.msra.mxu0 0
      %337 = vmatprep.subr.bf16.mxu0 0
      %338 = vmatpush2.bf16.msra.mxu0 0
      %339 = vmatprep.subr.bf16.mxu0 0
      %340 = vmatpush2.bf16.msra.mxu0 0
      %341 = vmatprep.subr.bf16.mxu0 0
      %342 = vmatpush2.bf16.msra.mxu0 0
      %343 = vmatprep.subr.bf16.mxu0 0
      %344 = vmatpush2.bf16.msra.mxu0 0
      %345 = vmatprep.subr.bf16.mxu0 0
      %346 = vmatpush2.bf16.msra.mxu0 0
      %347 = vmatprep.mubr.bf16.mxu0 0
      %348 = vmatmul.mubr.bf16.gmra.mxu0 %v313
      %v349 = vpop.f32.mrf.mxu0
      %v350 = vadd.f32 0.0, %v349
      %v351 = vpop.f32.mrf.mxu0
      %v352 = vpop.f32.mrf.mxu0
      %v353 = vpop.f32.mrf.mxu0
      %354 = vdwg.mxu0
      %v355 = vsel %vm312, %v247, 0
      %357 = vmatprep.subr.bf16.mxu0 0
      %358 = vmatpush1.bf16.msra.mxu0 0
      %359 = vmatprep.subr.bf16.mxu0 0
      %360 = vmatpush1.bf16.msra.mxu0 0
      %361 = vmatprep.subr.bf16.mxu0 0
      %362 = vmatpush1.bf16.msra.mxu0 0
      %363 = vmatprep.subr.bf16.mxu0 0
      %364 = vmatpush1.bf16.msra.mxu0 0
      %365 = vmatprep.subr.bf16.mxu0 0
      %366 = vmatpush1.bf16.msra.mxu0 0
      %367 = vmatprep.subr.bf16.mxu0 0
      %368 = vmatpush1.bf16.msra.mxu0 0
      %369 = vmatprep.subr.bf16.mxu0 0
      %370 = vmatpush1.bf16.msra.mxu0 0
      %371 = vmatprep.subr.bf16.mxu0 0
      %372 = vmatpush1.bf16.msra.mxu0 %v214
      %373 = vmatprep.subr.bf16.mxu0 0
      %374 = vmatpush2.bf16.msra.mxu0 0
      %375 = vmatprep.subr.bf16.mxu0 0
      %376 = vmatpush2.bf16.msra.mxu0 0
      %377 = vmatprep.subr.bf16.mxu0 0
      %378 = vmatpush2.bf16.msra.mxu0 0
      %379 = vmatprep.subr.bf16.mxu0 0
      %380 = vmatpush2.bf16.msra.mxu0 0
      %381 = vmatprep.subr.bf16.mxu0 0
      %382 = vmatpush2.bf16.msra.mxu0 0
      %383 = vmatprep.subr.bf16.mxu0 0
      %384 = vmatpush2.bf16.msra.mxu0 0
      %385 = vmatprep.subr.bf16.mxu0 0
      %386 = vmatpush2.bf16.msra.mxu0 0
      %387 = vmatprep.subr.bf16.mxu0 0
      %388 = vmatpush2.bf16.msra.mxu0 0
      %389 = vmatprep.mubr.bf16.mxu0 0
      %390 = vmatmul.mubr.bf16.gmra.mxu0 %v355
      %v391 = vpop.f32.mrf.mxu0
      %v392 = vadd.f32 %v350, %v391
      %v393 = vpop.f32.mrf.mxu0
      %v394 = vpop.f32.mrf.mxu0
      %v395 = vpop.f32.mrf.mxu0
      %396 = vdwg.mxu0
      %s397 = scalar_lea.vmem %s167, 4
      %v398 = vld [vmem:[%s397] sm:$0x3]
      %v400 = vcombine.low %v398, %v398
      %v402 = vunpack.c.l.s4 1983009808
      %v403 = vunpack.c.0.s8 %v402
      %v404 = vlaneseq
      %v405 = vshrl.u32 %v404, 7
      %v406 = vsub.s32 %v403, %v405
      %v407 = vrot.slane %v400, %v406
      %v409 = vunpack.c.l.s4 1983009808
      %v410 = vunpack.c.0.s8 %v409
      %v411 = vlaneseq
      %v412 = vshrl.u32 %v411, 7
      %v413 = vsub.s32 %v410, %v412
      %v414 = vrot.slane %v398, %v413
      %415 = vrot.lane.b32.xlu0 %v407, 127
      %v416 = vpop.permute.xlu0 %415
      %v417 = vcombine.low %v414, %v414
      %418 = vrot.lane.b32.xlu0 %v417, 119
      %v419 = vpop.permute.xlu0 %418
      %v420 = vcombine.low %v407, %v407
      %421 = vrot.lane.b32.xlu0 %v420, 118
      %v422 = vpop.permute.xlu0 %421
      %v425 = vsel %vm205, %v398, %v416
      %v427 = vsel %vm209, %v425, %v419
      %v429 = vsel %vm212, %v427, %v422
      %s431 = scalar_lea.vmem %s171, 16
      %v432 = vld [vmem:[%s431] sm:$0xf]
      %s433 = scalar_lea.vmem %s171, 24
      %v434 = vld [vmem:[%s433] sm:$0xf]
      %s435 = scalar_lea.vmem %s171, 48
      %v436 = vld [vmem:[%s435] sm:$0xf]
      %s437 = scalar_lea.vmem %s171, 56
      %v438 = vld [vmem:[%s437] sm:$0xf]
      %v440 = vunpack.c.l.b16 %v434
      %v441 = vpack.c.b16 %v440, %v440
      %442 = vrot.lane.b32.xlu0 %v441, 4
      %v443 = vpop.permute.xlu0 %442
      %v445 = vunpack.c.l.b16 %v436
      %v446 = vpack.c.b16 %v445, %v445
      %447 = vrot.lane.b32.xlu0 %v446, 8
      %v448 = vpop.permute.xlu0 %447
      %v450 = vunpack.c.l.b16 %v438
      %v451 = vpack.c.b16 %v450, %v450
      %452 = vrot.lane.b32.xlu0 %v451, 12
      %v453 = vpop.permute.xlu0 %452
      %v456 = vsel %vm238, %v432, %v443
      %v458 = vsel %vm242, %v456, %v448
      %v460 = vsel %vm245, %v458, %v453
      %v461 = vsel %vm312, %v460, 0
      %463 = vmatprep.subr.bf16.mxu0 0
      %464 = vmatpush1.bf16.msra.mxu0 0
      %465 = vmatprep.subr.bf16.mxu0 0
      %466 = vmatpush1.bf16.msra.mxu0 0
      %467 = vmatprep.subr.bf16.mxu0 0
      %468 = vmatpush1.bf16.msra.mxu0 0
      %469 = vmatprep.subr.bf16.mxu0 0
      %470 = vmatpush1.bf16.msra.mxu0 0
      %471 = vmatprep.subr.bf16.mxu0 0
      %472 = vmatpush1.bf16.msra.mxu0 0
      %473 = vmatprep.subr.bf16.mxu0 0
      %474 = vmatpush1.bf16.msra.mxu0 0
      %475 = vmatprep.subr.bf16.mxu0 0
      %476 = vmatpush1.bf16.msra.mxu0 0
      %477 = vmatprep.subr.bf16.mxu0 0
      %478 = vmatpush1.bf16.msra.mxu0 %v429
      %479 = vmatprep.subr.bf16.mxu0 0
      %480 = vmatpush2.bf16.msra.mxu0 0
      %481 = vmatprep.subr.bf16.mxu0 0
      %482 = vmatpush2.bf16.msra.mxu0 0
      %483 = vmatprep.subr.bf16.mxu0 0
      %484 = vmatpush2.bf16.msra.mxu0 0
      %485 = vmatprep.subr.bf16.mxu0 0
      %486 = vmatpush2.bf16.msra.mxu0 0
      %487 = vmatprep.subr.bf16.mxu0 0
      %488 = vmatpush2.bf16.msra.mxu0 0
      %489 = vmatprep.subr.bf16.mxu0 0
      %490 = vmatpush2.bf16.msra.mxu0 0
      %491 = vmatprep.subr.bf16.mxu0 0
      %492 = vmatpush2.bf16.msra.mxu0 0
      %493 = vmatprep.subr.bf16.mxu0 0
      %494 = vmatpush2.bf16.msra.mxu0 0
      %495 = vmatprep.mubr.bf16.mxu0 0
      %496 = vmatmul.mubr.bf16.gmra.mxu0 %v461
      %v497 = vpop.f32.mrf.mxu0
      %v498 = vadd.f32 0.0, %v497
      %v499 = vpop.f32.mrf.mxu0
      %v500 = vpop.f32.mrf.mxu0
      %v501 = vpop.f32.mrf.mxu0
      %502 = vdwg.mxu0
      %v503 = vadd.f32 %v392, %v498
      %s504 = scalar_lea.vmem %s167, 6
      %v505 = vld [vmem:[%s504] sm:$0x3]
      %v507 = vcombine.low %v505, %v505
      %v509 = vunpack.c.l.s4 1983009808
      %v510 = vunpack.c.0.s8 %v509
      %v511 = vlaneseq
      %v512 = vshrl.u32 %v511, 7
      %v513 = vsub.s32 %v510, %v512
      %v514 = vrot.slane %v507, %v513
      %v516 = vunpack.c.l.s4 1983009808
      %v517 = vunpack.c.0.s8 %v516
      %v518 = vlaneseq
      %v519 = vshrl.u32 %v518, 7
      %v520 = vsub.s32 %v517, %v519
      %v521 = vrot.slane %v505, %v520
      %522 = vrot.lane.b32.xlu0 %v514, 127
      %v523 = vpop.permute.xlu0 %522
      %v524 = vcombine.low %v521, %v521
      %525 = vrot.lane.b32.xlu0 %v524, 119
      %v526 = vpop.permute.xlu0 %525
      %v527 = vcombine.low %v514, %v514
      %528 = vrot.lane.b32.xlu0 %v527, 118
      %v529 = vpop.permute.xlu0 %528
      %v532 = vsel %vm205, %v505, %v523
      %v534 = vsel %vm209, %v532, %v526
      %v536 = vsel %vm212, %v534, %v529
      %s538 = scalar_lea.vmem %s171, 20
      %v539 = vld [vmem:[%s538] sm:$0xf]
      %s540 = scalar_lea.vmem %s171, 28
      %v541 = vld [vmem:[%s540] sm:$0xf]
      %s542 = scalar_lea.vmem %s171, 52
      %v543 = vld [vmem:[%s542] sm:$0xf]
      %s544 = scalar_lea.vmem %s171, 60
      %v545 = vld [vmem:[%s544] sm:$0xf]
      %v547 = vunpack.c.l.b16 %v541
      %v548 = vpack.c.b16 %v547, %v547
      %549 = vrot.lane.b32.xlu0 %v548, 4
      %v550 = vpop.permute.xlu0 %549
      %v552 = vunpack.c.l.b16 %v543
      %v553 = vpack.c.b16 %v552, %v552
      %554 = vrot.lane.b32.xlu0 %v553, 8
      %v555 = vpop.permute.xlu0 %554
      %v557 = vunpack.c.l.b16 %v545
      %v558 = vpack.c.b16 %v557, %v557
      %559 = vrot.lane.b32.xlu0 %v558, 12
      %v560 = vpop.permute.xlu0 %559
      %v563 = vsel %vm238, %v539, %v550
      %v565 = vsel %vm242, %v563, %v555
      %v567 = vsel %vm245, %v565, %v560
      %v568 = vsel %vm312, %v567, 0
      %570 = vmatprep.subr.bf16.mxu0 0
      %571 = vmatpush1.bf16.msra.mxu0 0
      %572 = vmatprep.subr.bf16.mxu0 0
      %573 = vmatpush1.bf16.msra.mxu0 0
      %574 = vmatprep.subr.bf16.mxu0 0
      %575 = vmatpush1.bf16.msra.mxu0 0
      %576 = vmatprep.subr.bf16.mxu0 0
      %577 = vmatpush1.bf16.msra.mxu0 0
      %578 = vmatprep.subr.bf16.mxu0 0
      %579 = vmatpush1.bf16.msra.mxu0 0
      %580 = vmatprep.subr.bf16.mxu0 0
      %581 = vmatpush1.bf16.msra.mxu0 0
      %582 = vmatprep.subr.bf16.mxu0 0
      %583 = vmatpush1.bf16.msra.mxu0 0
      %584 = vmatprep.subr.bf16.mxu0 0
      %585 = vmatpush1.bf16.msra.mxu0 %v536
      %586 = vmatprep.subr.bf16.mxu0 0
      %587 = vmatpush2.bf16.msra.mxu0 0
      %588 = vmatprep.subr.bf16.mxu0 0
      %589 = vmatpush2.bf16.msra.mxu0 0
      %590 = vmatprep.subr.bf16.mxu0 0
      %591 = vmatpush2.bf16.msra.mxu0 0
      %592 = vmatprep.subr.bf16.mxu0 0
      %593 = vmatpush2.bf16.msra.mxu0 0
      %594 = vmatprep.subr.bf16.mxu0 0
      %595 = vmatpush2.bf16.msra.mxu0 0
      %596 = vmatprep.subr.bf16.mxu0 0
      %597 = vmatpush2.bf16.msra.mxu0 0
      %598 = vmatprep.subr.bf16.mxu0 0
      %599 = vmatpush2.bf16.msra.mxu0 0
      %600 = vmatprep.subr.bf16.mxu0 0
      %601 = vmatpush2.bf16.msra.mxu0 0
      %602 = vmatprep.mubr.bf16.mxu0 0
      %603 = vmatmul.mubr.bf16.gmra.mxu0 %v568
      %v604 = vpop.f32.mrf.mxu0
      %v605 = vadd.f32 0.0, %v604
      %v606 = vpop.f32.mrf.mxu0
      %v607 = vpop.f32.mrf.mxu0
      %v608 = vpop.f32.mrf.mxu0
      %609 = vdwg.mxu0
      %v610 = vadd.f32 %v503, %v605
      %v611 = vlaneseq
      %v612 = vand.u32 %v611, 127
      %vm613 = vcmp.lt.s32.totalorder %v612, 0
      %v614 = vsub.s32 0, %v612
      %v615 = vsel %vm613, %v614, %v612
      %v616 = vmul.u32.u64.compose %v615, 3817748708
      %v617 = vextract.low.u32 %v616
      %v618 = vextract.high.u32 %v616
      %v619 = vshrl.u32 %v618, 3
      %v620 = vmul.u32 %v619, 9
      %v621 = vsub.s32 %v615, %v620
      %v622 = vsub.s32 0, %v621
      %v623 = vsel %vm613, %v622, %v621
      %vm624 = vcmp.ne.s32.totalorder %v623, 0
      %vm625 = vcmp.lt.s32.totalorder %v623, 0
      %vm626 = vmand %vm625, %vm624
      %v627 = vadd.s32 %v623, 9
      %v628 = vsel %vm626, %v627, %v623
      %vm629 = vcmp.lt.s32.totalorder %v628, 8
      %v630 = vsel %vm629, 1, 0
      %vm631 = vcmp.eq.s32.totalorder %v630, 1
      %v632 = vsel %vm631, %v610, 0.0
      %vm633 = vcmask 588800
      %v634 = vsel %vm633, %v632, 0.0
      %635 = vadd.xlane.f32.xlu0 %v634
      %v636 = vpop.xlane.xlu0 %635
      %v637 = vmul.f32 %v632, %v632
      %v638 = vsel %vm633, %v637, 0.0
      %639 = vadd.xlane.f32.xlu0 %v638
      %v640 = vpop.xlane.xlu0 %639
      %v641 = vmul.f32 %v636, 0.015625
      %v642 = vmul.f32 %v640, 0.015625
      %v643 = vmul.f32 %v641, %v641
      %v644 = vsub.f32 %v642, %v643
      %v645 = vsub.f32 %v610, %v641
      %v646 = vadd.f32 %v644, 1e-05
      %v647 = vrsqrt.pop %v646
      %v648 = vmul.f32 %v645, %v647
      %vm649 = vcmp.ge.f32.partialorder %v648, 0.0
      %v650 = vmul.f32 %v648, 0.2
      %v651 = vsel %vm649, %v648, %v650
      %v652 = vpack.c.bf16 %v651, %v651
      %vm653 = vcmask 584704
      %654 = vst.msk [vmem:[%s178] sm:$0xf] %vm653, %v652
      %p655 = scmp.lt.s32.totalorder %s17, 1
      %s656 = scalar_select %p655, %s17, 1
      %p657 = scmp.lt.s32.totalorder %s18, 0
      %s658 = scalar_select %p657, %s18, 0
      %s659 = sadd.s32 %s658, %s656
      %s660 = smul.addr %s659, 4
      %s661 = scalar_lea.vmem %s2, %s660
      // Predicated region
      $region29: #{conv_block.1} parent=27 // pred_check
        %p662 = pneg %p97
      $region30: #{conv_block.1} parent=27 // pred_check_branch
        %664 = sbr.rel (%p662) target = $region32
      $region31: #{conv_block.1} parent=27 // pred_region
        _
      $region32: #{conv_block.1} parent=27 // pred_fallthru
        _
    $region28: #{conv_block.1} parent=5 // pred_fallthru
      _
    %p665 = scmp.le.s32.totalorder 2, %s8
    // Predicated region
    $region33: #{conv_block.1} parent=5 // pred_check
      %p666 = pneg %p665
    $region34: #{conv_block.1} parent=5 // pred_check_branch
      %668 = sbr.rel (%p666) target = $region36
    $region35: #{conv_block.1} parent=5 // pred_region
      %s669 = ssub.s32 %s8, 2
      // Predicated region
      $region37: #{conv_block.1} parent=35 // pred_check
        %p670 = pneg %p103
      $region38: #{conv_block.1} parent=35 // pred_check_branch
        %672 = sbr.rel (%p670) target = $region40
      $region39: #{conv_block.1} parent=35 // pred_region
        %p673 = scmp.lt.s32.totalorder %s19, 1
        %s674 = scalar_select %p673, %s19, 1
        %p675 = scmp.lt.s32.totalorder %s20, 0
        %s676 = scalar_select %p675, %s20, 0
        %s677 = sadd.s32 %s676, %s674
        %s678 = smul.addr %s677, 4
        %s679 = scalar_lea.vmem %s2, %s678
      $region40: #{conv_block.1} parent=35 // pred_fallthru
        _
    $region36: #{conv_block.1} parent=5 // pred_fallthru
      _
  $region6: #{conv_block.1} parent=0 // loop_footer
    %s12 = sadd.s32 1, %s8
  $region7: #{conv_block.1} parent=0 // loop_footer_branch
    %7 = sbr.rel target = $region3
  $region8: #{conv_block.1} parent=0 // loop_exit
    _

</llo_original>
